<compile_context>
chip_gen: v6e
topology: v6e:2x2x1
jax: 0.10.0
libtpu: 0.0.40
codegen_flags: <defaults>
</compile_context>

<pallas_src>
import functools

import jax
import jax.numpy as jnp
from jax.experimental import pallas as pl
from jax.experimental.pallas import tpu as pltpu


def _round_up(x, m):
    return ((x + m - 1) // m) * m


def _pick_tile(dim, cap, granule):
    """Return (tile, padded_dim). Tile is granule-aligned and ~<= cap.

    When dim exceeds the cap, the tile is shrunk so padding waste stays small
    (on the order of one granule) instead of up to a whole tile."""
    cap = max(int(cap), granule)
    if dim <= cap:
        t = _round_up(dim, granule)
        return t, t
    n_tiles = -(-dim // cap)                       # ceil(dim / cap)
    t = _round_up(-(-dim // n_tiles), granule)     # ceil(dim / n_tiles), aligned
    return t, _round_up(dim, t)


def _device_defaults():
    """Per-generation tile caps / VMEM ceiling / input pipelining depth."""
    kind = ""
    try:
        kind = jax.devices()[0].device_kind.lower()
    except Exception:
        pass
    if "v6" in kind:
        # v6e: 128 MiB VMEM, ~1.4 TB/s HBM, 918 TF/s bf16 -> wants big tiles.
        return dict(tm_cap=1024, tn_cap=1024, tk_cap=1024,
                    vmem_limit=100 * 1024 * 1024, in_bufs=None)
    if "v5" in kind:
        # v5e: slow HBM, DMA-latency sensitive -> moderate tiles, deeper buffers.
        return dict(tm_cap=512, tn_cap=512, tk_cap=1024,
                    vmem_limit=96 * 1024 * 1024, in_bufs=3)
    # v7x / unknown: only 64 MiB physical VMEM, but 3.2 TB/s HBM means 512-wide
    # tiles already reach the MXU roofline -> conservative VMEM ceiling.
    return dict(tm_cap=512, tn_cap=512, tk_cap=1024,
                vmem_limit=56 * 1024 * 1024, in_bufs=None)


def _input_spec(shape, index_map, bufs):
    if bufs is None:
        return pl.BlockSpec(shape, index_map)
    try:
        return pl.BlockSpec(shape, index_map, pipeline_mode=pl.Buffered(bufs))
    except TypeError:
        return pl.BlockSpec(shape, index_map)


def _lora_linear_kernel(x_ref, wt_ref, b_ref, xa_ref, lb_ref, o_ref, acc_ref):
    k = pl.program_id(2)

    @pl.when(k == 0)
    def _init():
        acc_ref[...] = jnp.zeros_like(acc_ref)

    # Base path: (tm, tk) @ (tk, tn) on the MXU, f32 accumulation.
    acc_ref[...] += jnp.dot(x_ref[...], wt_ref[...],
                            preferred_element_type=jnp.float32)

    @pl.when(k == pl.num_programs(2) - 1)
    def _finalize():
        out = acc_ref[...] + b_ref[...].astype(jnp.float32)
        # Rank-r LoRA update as unrolled VPU broadcast-FMAs (epilogue filler —
        # keeps the MXU on the base matmul).  `scaling` is already folded into
        # xa in the wrapper.
        xa = xa_ref[...].astype(jnp.float32)       # (tm, r)
        lb = lb_ref[...].astype(jnp.float32)       # (r, tn)
        for t in range(lb.shape[0]):
            out = out + xa[:, t:t + 1] * lb[t:t + 1, :]
        o_ref[...] = out.astype(o_ref.dtype)


class FusedLoRALinear:
    """y = x @ W.T + bias + scaling * (x @ A) @ B, fused on TPU via Pallas.

    Frozen parameters (W, bias, B) are transposed / padded / cast once at
    construction; per-call work is only x padding and the tiny (M, r) LoRA-A
    projection."""

    def __init__(self, w, bias, lora_a, lora_b, *, scaling,
                 compute_dtype=jnp.bfloat16, tm=None, tn=None, tk=None):
        N, K = w.shape
        r = lora_a.shape[1]
        assert lora_a.shape == (K, r)
        assert lora_b.shape == (r, N)
        if bias is None:
            bias = jnp.zeros((N,), jnp.float32)
        assert bias.shape == (N,)

        self.N, self.K, self.r = N, K, r
        self.scaling = float(scaling)
        self.compute_dtype = jnp.dtype(compute_dtype)

        cfg = _device_defaults()
        self._tm_cap = tm if tm is not None else cfg["tm_cap"]
        tn_cap = tn if tn is not None else cfg["tn_cap"]
        tk_cap = tk if tk is not None else cfg["tk_cap"]
        self._vmem_limit = cfg["vmem_limit"]
        self._in_bufs = cfg["in_bufs"]

        self.tn, self.Np = _pick_tile(N, tn_cap, 128)
        self.tk, self.Kp = _pick_tile(K, tk_cap, 128)

        # One-time prep of the frozen parameters (no per-call pad/cast of W).
        # W is pre-transposed to (K, N) so the in-kernel contraction is a
        # plain (tm,tk)@(tk,tn) — guaranteed no XLU relayout on any generation.
        wt = jnp.asarray(w).T.astype(self.compute_dtype)                # (K, N)
        self.wt_p = jnp.pad(wt, ((0, self.Kp - K), (0, self.Np - N)))
        self.bias_p = jnp.pad(jnp.asarray(bias, jnp.float32),
                              (0, self.Np - N)).reshape(1, self.Np)
        self.lora_a = jnp.asarray(lora_a, jnp.float32)                  # (K, r)
        self.lb_p = jnp.pad(jnp.asarray(lora_b, jnp.float32),
                            ((0, 0), (0, self.Np - N)))                 # (r, Np)

    def __call__(self, x):
        orig_shape = x.shape
        assert orig_shape[-1] == self.K
        out_dtype = x.dtype
        x2 = x.reshape(-1, self.K)
        M = x2.shape[0]

        sub = 16 if self.compute_dtype == jnp.bfloat16 else 8
        tm, Mp = _pick_tile(M, self._tm_cap, sub)
        tn, tk, Np, Kp, r = self.tn, self.tk, self.Np, self.Kp, self.r
        grid = (Mp // tm, Np // tn, Kp // tk)

        # Tiny (M, r) LoRA-A projection — computed once per call (NOT per
        # N-tile inside the kernel); scaling folded in here.
        xa = self.scaling * jnp.dot(x2.astype(jnp.float32), self.lora_a,
                                    preferred_element_type=jnp.float32)
        xa_p = jnp.pad(xa, ((0, Mp - M), (0, 0)))                       # (Mp, r)
        x_p = jnp.pad(x2.astype(self.compute_dtype),
                      ((0, Mp - M), (0, Kp - self.K)))                  # (Mp, Kp)

        cdt = self.compute_dtype.itemsize
        cost = pl.CostEstimate(
            flops=2 * Mp * Np * Kp + 2 * Mp * r * Np,
            transcendentals=0,
            bytes_accessed=int(
                grid[1] * Mp * Kp * cdt            # x re-read per N tile
                + grid[0] * Kp * Np * cdt          # W re-read per M tile
                + grid[1] * Mp * r * 4             # xa
                + grid[0] * (r + 1) * Np * 4       # lora_B + bias
                + Mp * Np * jnp.dtype(out_dtype).itemsize),
        )

        out_p = pl.pallas_call(
            _lora_linear_kernel,
            out_shape=jax.ShapeDtypeStruct((Mp, Np), out_dtype),
            grid_spec=pltpu.PrefetchScalarGridSpec(
                num_scalar_prefetch=0,
                grid=grid,
                in_specs=[
                    _input_spec((tm, tk), lambda i, j, k: (i, k), self._in_bufs),
                    _input_spec((tk, tn), lambda i, j, k: (k, j), self._in_bufs),
                    pl.BlockSpec((1, tn), lambda i, j, k: (0, j)),   # bias
                    pl.BlockSpec((tm, r), lambda i, j, k: (i, 0)),   # scaled x@A
                    pl.BlockSpec((r, tn), lambda i, j, k: (0, j)),   # lora_B
                ],
                out_specs=pl.BlockSpec((tm, tn), lambda i, j, k: (i, j)),
                scratch_shapes=[pltpu.VMEM((tm, tn), jnp.float32)],
            ),
            compiler_params=pltpu.CompilerParams(
                dimension_semantics=("parallel", "parallel", "arbitrary"),
                vmem_limit_bytes=self._vmem_limit,
            ),
            cost_estimate=cost,
        )(x_p, self.wt_p, self.bias_p, xa_p, self.lb_p)

        return out_p[:M, :self.N].reshape(*orig_shape[:-1], self.N)


if __name__ == "__main__":
    # Small shapes consistent with a LoRA-wrapped Linear(in=32, out=32), rank=4.
    M = 8          # batch * seq
    K = 32         # in_features
    N = 32         # out_features
    rank = 4
    alpha = 0.04
    scaling = alpha / rank

    key = jax.random.PRNGKey(0)
    kx, kw, kb, ka, klb = jax.random.split(key, 5)

    x = jax.random.normal(kx, (M, K), dtype=jnp.float32)
    w = jax.random.normal(kw, (N, K), dtype=jnp.float32) * 0.1
    bias = jax.random.normal(kb, (N,), dtype=jnp.float32) * 0.1
    # NOTE: the module's reset_parameters() zeros lora_A (LoRA term == 0);
    # use a deterministic nonzero init so the fused LoRA path is exercised.
    lora_a = jax.random.normal(ka, (K, rank), dtype=jnp.float32) * 0.1
    lora_b = jax.random.normal(klb, (rank, N), dtype=jnp.float32)

    layer = FusedLoRALinear(w, bias, lora_a, lora_b, scaling=scaling)
    out = jax.block_until_ready(layer(x))

    # Pure-JAX f32 reference (matches the PyTorch forward).
    ref = x @ w.T + bias + (x @ lora_a @ lora_b) * scaling
    assert out.shape == (M, N)
    # bf16 MXU operands with f32 accumulation -> slightly looser tolerance.
    assert jnp.allclose(out, ref, atol=2e-2, rtol=2e-2), "mismatch vs reference"

    print("KERNEL_OK")
</pallas_src>

<mosaic_0001>
module attributes {stable_mosaic.version = 11 : i64} {
  func.func @_lora_linear_kernel(%arg0: i32, %arg1: i32, %arg2: i32, %arg3: memref<16x128xbf16, #tpu.memory_space<vmem>>, %arg4: memref<128x128xbf16, #tpu.memory_space<vmem>>, %arg5: memref<1x128xf32, #tpu.memory_space<vmem>>, %arg6: memref<16x4xf32, #tpu.memory_space<vmem>>, %arg7: memref<4x128xf32, #tpu.memory_space<vmem>>, %arg8: memref<16x128xf32, #tpu.memory_space<vmem>>, %arg9: memref<16x128xf32, #tpu.memory_space<vmem>>) attributes {dimension_semantics = [#tpu.dimension_semantics<parallel>, #tpu.dimension_semantics<parallel>, #tpu.dimension_semantics<arbitrary>], iteration_bounds = array<i64: 1, 1, 1>, scalar_prefetch = 0 : i64, scratch_operands = 1 : i64, tpu.core_type = #tpu.core_type<tc>, window_params = [{transform_indices = @transform_0, window_bounds = array<i64: 16, 128>}, {transform_indices = @transform_1, window_bounds = array<i64: 128, 128>}, {transform_indices = @transform_2, window_bounds = array<i64: 1, 128>}, {transform_indices = @transform_3, window_bounds = array<i64: 16, 4>}, {transform_indices = @transform_4, window_bounds = array<i64: 4, 128>}, {transform_indices = @transform_5, window_bounds = array<i64: 16, 128>}]} {
    %c0_i32 = arith.constant 0 : i32
    %0 = arith.cmpi eq, %arg2, %c0_i32 : i32
    %1 = arith.extui %0 : i1 to i32
    %c0_i32_0 = arith.constant 0 : i32
    %2 = arith.cmpi ne, %1, %c0_i32_0 : i32
    scf.if %2 {
      %cst_10 = arith.constant 0.000000e+00 : f32
      %12 = vector.broadcast %cst_10 : f32 to vector<16x128xf32>
      %c0_11 = arith.constant 0 : index
      %c0_12 = arith.constant 0 : index
      %13 = vector.load %arg9[%c0_11, %c0_12] : memref<16x128xf32, #tpu.memory_space<vmem>>, vector<16x128xf32>
      tpu.vector_store %arg9[%c0_11, %c0_12], %12 {strides = array<i32>} : memref<16x128xf32, #tpu.memory_space<vmem>>, vector<16x128xf32>,
    } else {
    }
    %c0 = arith.constant 0 : index
    %c0_1 = arith.constant 0 : index
    %3 = vector.load %arg9[%c0, %c0_1] : memref<16x128xf32, #tpu.memory_space<vmem>>, vector<16x128xf32>
    %c0_2 = arith.constant 0 : index
    %c0_3 = arith.constant 0 : index
    %4 = vector.load %arg3[%c0_2, %c0_3] : memref<16x128xbf16, #tpu.memory_space<vmem>>, vector<16x128xbf16>
    %c0_4 = arith.constant 0 : index
    %c0_5 = arith.constant 0 : index
    %5 = vector.load %arg4[%c0_4, %c0_5] : memref<128x128xbf16, #tpu.memory_space<vmem>>, vector<128x128xbf16>
    %cst = arith.constant dense<0.000000e+00> : vector<16x128xf32>
    %6 = tpu.matmul %4, %5, %cst {dimension_numbers = #tpu.dot_dimension_numbers<[1], [0], [0], [1], [0, 0, 1, 1], [], []>} : vector<16x128xbf16>, vector<128x128xbf16>, vector<16x128xf32> -> vector<16x128xf32>
    %7 = arith.addf %3, %6 : vector<16x128xf32>
    %c0_6 = arith.constant 0 : index
    %c0_7 = arith.constant 0 : index
    %8 = vector.load %arg9[%c0_6, %c0_7] : memref<16x128xf32, #tpu.memory_space<vmem>>, vector<16x128xf32>
    tpu.vector_store %arg9[%c0_6, %c0_7], %7 {strides = array<i32>} : memref<16x128xf32, #tpu.memory_space<vmem>>, vector<16x128xf32>,
    %c0_i32_8 = arith.constant 0 : i32
    %9 = arith.cmpi eq, %arg2, %c0_i32_8 : i32
    %10 = arith.extui %9 : i1 to i32
    %c0_i32_9 = arith.constant 0 : i32
    %11 = arith.cmpi ne, %10, %c0_i32_9 : i32
    scf.if %11 {
      %c0_10 = arith.constant 0 : index
      %c0_11 = arith.constant 0 : index
      %12 = vector.load %arg9[%c0_10, %c0_11] : memref<16x128xf32, #tpu.memory_space<vmem>>, vector<16x128xf32>
      %c0_12 = arith.constant 0 : index
      %c0_13 = arith.constant 0 : index
      %13 = vector.load %arg5[%c0_12, %c0_13] : memref<1x128xf32, #tpu.memory_space<vmem>>, vector<1x128xf32>
      %14 = vector.broadcast %13 : vector<1x128xf32> to vector<16x128xf32>
      %15 = arith.addf %12, %14 : vector<16x128xf32>
      %c0_14 = arith.constant 0 : index
      %c0_15 = arith.constant 0 : index
      %16 = vector.load %arg6[%c0_14, %c0_15] : memref<16x4xf32, #tpu.memory_space<vmem>>, vector<16x4xf32>
      %c0_16 = arith.constant 0 : index
      %c0_17 = arith.constant 0 : index
      %17 = vector.load %arg7[%c0_16, %c0_17] : memref<4x128xf32, #tpu.memory_space<vmem>>, vector<4x128xf32>
      %18 = vector.extract_strided_slice %16 {offsets = [0, 0], sizes = [16, 1], strides = [1, 1]} : vector<16x4xf32> to vector<16x1xf32>
      %19 = vector.extract_strided_slice %17 {offsets = [0, 0], sizes = [1, 128], strides = [1, 1]} : vector<4x128xf32> to vector<1x128xf32>
      %20 = vector.broadcast %18 : vector<16x1xf32> to vector<16x128xf32>
      %21 = vector.broadcast %19 : vector<1x128xf32> to vector<16x128xf32>
      %22 = arith.mulf %20, %21 : vector<16x128xf32>
      %23 = arith.addf %15, %22 : vector<16x128xf32>
      %24 = vector.extract_strided_slice %16 {offsets = [0, 1], sizes = [16, 1], strides = [1, 1]} : vector<16x4xf32> to vector<16x1xf32>
      %25 = vector.extract_strided_slice %17 {offsets = [1, 0], sizes = [1, 128], strides = [1, 1]} : vector<4x128xf32> to vector<1x128xf32>
      %26 = vector.broadcast %24 : vector<16x1xf32> to vector<16x128xf32>
      %27 = vector.broadcast %25 : vector<1x128xf32> to vector<16x128xf32>
      %28 = arith.mulf %26, %27 : vector<16x128xf32>
      %29 = arith.addf %23, %28 : vector<16x128xf32>
      %30 = vector.extract_strided_slice %16 {offsets = [0, 2], sizes = [16, 1], strides = [1, 1]} : vector<16x4xf32> to vector<16x1xf32>
      %31 = vector.extract_strided_slice %17 {offsets = [2, 0], sizes = [1, 128], strides = [1, 1]} : vector<4x128xf32> to vector<1x128xf32>
      %32 = vector.broadcast %30 : vector<16x1xf32> to vector<16x128xf32>
      %33 = vector.broadcast %31 : vector<1x128xf32> to vector<16x128xf32>
      %34 = arith.mulf %32, %33 : vector<16x128xf32>
      %35 = arith.addf %29, %34 : vector<16x128xf32>
      %36 = vector.extract_strided_slice %16 {offsets = [0, 3], sizes = [16, 1], strides = [1, 1]} : vector<16x4xf32> to vector<16x1xf32>
      %37 = vector.extract_strided_slice %17 {offsets = [3, 0], sizes = [1, 128], strides = [1, 1]} : vector<4x128xf32> to vector<1x128xf32>
      %38 = vector.broadcast %36 : vector<16x1xf32> to vector<16x128xf32>
      %39 = vector.broadcast %37 : vector<1x128xf32> to vector<16x128xf32>
      %40 = arith.mulf %38, %39 : vector<16x128xf32>
      %41 = arith.addf %35, %40 : vector<16x128xf32>
      %c0_18 = arith.constant 0 : index
      %c0_19 = arith.constant 0 : index
      %42 = vector.load %arg8[%c0_18, %c0_19] : memref<16x128xf32, #tpu.memory_space<vmem>>, vector<16x128xf32>
      tpu.vector_store %arg8[%c0_18, %c0_19], %41 {strides = array<i32>} : memref<16x128xf32, #tpu.memory_space<vmem>>, vector<16x128xf32>,
    } else {
    }
    return
  }
  func.func @transform_0(%arg0: i32, %arg1: i32, %arg2: i32) -> (i32, i32) {
    %c0_i32 = arith.constant 0 : i32
    return %arg0, %arg2 : i32, i32
  }
  func.func @transform_1(%arg0: i32, %arg1: i32, %arg2: i32) -> (i32, i32) {
    %c0_i32 = arith.constant 0 : i32
    return %arg2, %arg1 : i32, i32
  }
  func.func @transform_2(%arg0: i32, %arg1: i32, %arg2: i32) -> (i32, i32) {
    %c0_i32 = arith.constant 0 : i32
    %c0_i32_0 = arith.constant 0 : i32
    return %c0_i32, %arg1 : i32, i32
  }
  func.func @transform_3(%arg0: i32, %arg1: i32, %arg2: i32) -> (i32, i32) {
    %c0_i32 = arith.constant 0 : i32
    %c0_i32_0 = arith.constant 0 : i32
    return %arg0, %c0_i32 : i32, i32
  }
  func.func @transform_4(%arg0: i32, %arg1: i32, %arg2: i32) -> (i32, i32) {
    %c0_i32 = arith.constant 0 : i32
    %c0_i32_0 = arith.constant 0 : i32
    return %c0_i32, %arg1 : i32, i32
  }
  func.func @transform_5(%arg0: i32, %arg1: i32, %arg2: i32) -> (i32, i32) {
    %c0_i32 = arith.constant 0 : i32
    return %arg0, %arg1 : i32, i32
  }
}

</mosaic_0001>

<llo_original>
// kernel: tpu_custom_call.1
$region0: #{tpu_custom_call.1}
  #allocation0 [shape = 'u32[]', space=smem, size = 0x4, offset = 0x4, fixed_abs, tag = 'smem constant byte address 0x4 - core index']
  #allocation1 [shape = 'u32[144,128]{1,0:T(1,128)}', space=vmem, size = 0x12000, scoped, tag = 'internal scratch']
  #allocation2 [shape = 'f32[16,128]{1,0:T(8,128)}', space=vmem, size = 0x2000, scoped, tag = 'scratch operand']
  %s0 = inlined_call_operand.vmem [shape: bf16[16,128], index: 0, kind: input, shape index: {}]
  %s1 = inlined_call_operand.hbm [shape: bf16[128,128], index: 1, kind: input, shape index: {}]
  %s2 = inlined_call_operand.vmem [shape: f32[1,128], index: 2, kind: input, shape index: {}]
  %s3 = inlined_call_operand.vmem [shape: f32[16,4], index: 3, kind: input, shape index: {}]
  %s4 = inlined_call_operand.vmem [shape: f32[4,128], index: 4, kind: input, shape index: {}]
  %s5 = inlined_call_operand.hbm [shape: f32[16,128], index: 5, kind: output, shape index: {}]
  %s6 = sld [smem:[#allocation0]]
  $region42: #{tpu_custom_call.1} parent=0
    _
  %s8 = ssub.s32 1, %s6
  %s9 = scalar_select 0, %s8, %s6
  $region1: #{tpu_custom_call.1} parent=0
    #allocation3 [shape = 'u8[32768]{0}', space=vmem, size = 0x8000, scoped, tag = 'input window, operand 1, single buffered']
    #allocation4 [shape = 's32[1]{0}', space=sflag, size = 0x4, scoped, tag = 'scoped memory for tpu_custom_call.1']
    #allocation5 [shape = 's32[1]{0}', space=sflag, size = 0x4, scoped, tag = 'scoped memory for tpu_custom_call.1']
    #allocation6 [shape = 'u8[8192]{0}', space=vmem, size = 0x2000, scoped, tag = 'output window, operand 0, single buffered']
    %10 = vsyncpa [#allocation4], 0
    %11 = vsyncpa [#allocation5], 0
    // Predicated region
    $region2: #{tpu_custom_call.1} parent=1 // pred_check
      _
    $region3: #{tpu_custom_call.1} parent=1 // pred_check_branch
      %13 = sbr.rel (0) target = $region5
    $region4: #{tpu_custom_call.1} parent=1 // pred_region
      _
    $region5: #{tpu_custom_call.1} parent=1 // pred_fallthru
      _
    // Predicated region
    $region6: #{tpu_custom_call.1} parent=1 // pred_check
      _
    $region7: #{tpu_custom_call.1} parent=1 // pred_check_branch
      %15 = sbr.rel (0) target = $region9
    $region8: #{tpu_custom_call.1} parent=1 // pred_region
      %s17 = ssub.s32 1024, 1024
      %18 = vsyncadd [#allocation4], %s17
      %s19 = sshll.u32 [#allocation3], 4
      %s20 = int_to_ptr.vmem [resolvable:$true] %s19
      %25 = dma.hbm_to_vmem [thread:$0]  %s1, 1024, %s20, [#allocation4], 64, 64, 4
    $region9: #{tpu_custom_call.1} parent=1 // pred_fallthru
      _
    // Predicated region
    $region10: #{tpu_custom_call.1} parent=1 // pred_check
      _
    $region11: #{tpu_custom_call.1} parent=1 // pred_check_branch
      %27 = sbr.rel (0) target = $region13
    $region12: #{tpu_custom_call.1} parent=1 // pred_region
      _
    $region13: #{tpu_custom_call.1} parent=1 // pred_fallthru
      _
    // Predicated region
    $region14: #{tpu_custom_call.1} parent=1 // pred_check
      _
    $region15: #{tpu_custom_call.1} parent=1 // pred_check_branch
      %29 = sbr.rel (0) target = $region17
    $region16: #{tpu_custom_call.1} parent=1 // pred_region
      _
    $region17: #{tpu_custom_call.1} parent=1 // pred_fallthru
      _
    // Predicated region
    $region18: #{tpu_custom_call.1} parent=1 // pred_check
      _
    $region19: #{tpu_custom_call.1} parent=1 // pred_check_branch
      %31 = sbr.rel (0) target = $region21
    $region20: #{tpu_custom_call.1} parent=1 // pred_region
      _
    $region21: #{tpu_custom_call.1} parent=1 // pred_fallthru
      _
    // Predicated region
    $region22: #{tpu_custom_call.1} parent=1 // pred_check
      _
    $region23: #{tpu_custom_call.1} parent=1 // pred_check_branch
      %33 = sbr.rel (0) target = $region25
    $region24: #{tpu_custom_call.1} parent=1 // pred_region
      %34 = dma.done [#allocation4], 1024
    $region25: #{tpu_custom_call.1} parent=1 // pred_fallthru
      _
    %p36 = scmp.eq.s32.totalorder 0, 0
    // Predicated region
    $region26: #{tpu_custom_call.1} parent=1 // pred_check
      %p37 = pneg %p36
    $region27: #{tpu_custom_call.1} parent=1 // pred_check_branch
      %39 = sbr.rel (%p37) target = $region29
    $region28: #{tpu_custom_call.1} parent=1 // pred_region
      %40 = vst [vmem:[#allocation2] sm:$0xff] 0.0
      %41 = vst [vmem:[#allocation2 + $0x8] sm:$0xff] 0.0
    $region29: #{tpu_custom_call.1} parent=1 // pred_fallthru
      _
    %v42 = vld [vmem:[#allocation2] sm:$0xff]
    %v43 = vld [vmem:[#allocation2 + $0x8] sm:$0xff]
    %v44 = vld [vmem:[%s0] sm:$0xf]
    %v45 = vld [vmem:[%s0 + $0x4] sm:$0xf]
    %v46 = vld [vmem:[#allocation3] sm:$0xf]
    %v47 = vld [vmem:[#allocation3 + $0x4] sm:$0xf]
    %v48 = vld [vmem:[#allocation3 + $0x8] sm:$0xf]
    %v49 = vld [vmem:[#allocation3 + $0xc] sm:$0xf]
    %v50 = vld [vmem:[#allocation3 + $0x10] sm:$0xf]
    %v51 = vld [vmem:[#allocation3 + $0x14] sm:$0xf]
    %v52 = vld [vmem:[#allocation3 + $0x18] sm:$0xf]
    %v53 = vld [vmem:[#allocation3 + $0x1c] sm:$0xf]
    %v54 = vld [vmem:[#allocation3 + $0x20] sm:$0xf]
    %v55 = vld [vmem:[#allocation3 + $0x24] sm:$0xf]
    %v56 = vld [vmem:[#allocation3 + $0x28] sm:$0xf]
    %v57 = vld [vmem:[#allocation3 + $0x2c] sm:$0xf]
    %v58 = vld [vmem:[#allocation3 + $0x30] sm:$0xf]
    %v59 = vld [vmem:[#allocation3 + $0x34] sm:$0xf]
    %v60 = vld [vmem:[#allocation3 + $0x38] sm:$0xf]
    %v61 = vld [vmem:[#allocation3 + $0x3c] sm:$0xf]
    %v64 = vunpack.c.l.b16 %v44
    %v65 = vunpack.c.l.b16 %v45
    %v66 = vpack.c.b16 %v65, %v64
    %v84 = vunpack.c.l.b16 %v46
    %v85 = vunpack.c.l.b16 %v47
    %v86 = vunpack.c.l.b16 %v48
    %v87 = vunpack.c.l.b16 %v49
    %v88 = vunpack.c.l.b16 %v50
    %v89 = vunpack.c.l.b16 %v51
    %v90 = vunpack.c.l.b16 %v52
    %v91 = vunpack.c.l.b16 %v53
    %v92 = vunpack.c.l.b16 %v54
    %v93 = vunpack.c.l.b16 %v55
    %v94 = vunpack.c.l.b16 %v56
    %v95 = vunpack.c.l.b16 %v57
    %v96 = vunpack.c.l.b16 %v58
    %v97 = vunpack.c.l.b16 %v59
    %v98 = vunpack.c.l.b16 %v60
    %v99 = vunpack.c.l.b16 %v61
    %v100 = vpack.c.b16 %v85, %v84
    %v101 = vpack.c.b16 %v87, %v86
    %v102 = vpack.c.b16 %v89, %v88
    %v103 = vpack.c.b16 %v91, %v90
    %v104 = vpack.c.b16 %v93, %v92
    %v105 = vpack.c.b16 %v95, %v94
    %v106 = vpack.c.b16 %v97, %v96
    %v107 = vpack.c.b16 %v99, %v98
    %116 = vmatprep.subr.bf16.mxu0 0
    %117 = vmatpush1.bf16.msra.mxu0 %v107
    %118 = vmatprep.subr.bf16.mxu0 0
    %119 = vmatpush1.bf16.msra.mxu0 %v106
    %120 = vmatprep.subr.bf16.mxu0 0
    %121 = vmatpush1.bf16.msra.mxu0 %v105
    %122 = vmatprep.subr.bf16.mxu0 0
    %123 = vmatpush1.bf16.msra.mxu0 %v104
    %124 = vmatprep.subr.bf16.mxu0 0
    %125 = vmatpush1.bf16.msra.mxu0 %v103
    %126 = vmatprep.subr.bf16.mxu0 0
    %127 = vmatpush1.bf16.msra.mxu0 %v102
    %128 = vmatprep.subr.bf16.mxu0 0
    %129 = vmatpush1.bf16.msra.mxu0 %v101
    %130 = vmatprep.subr.bf16.mxu0 0
    %131 = vmatpush1.bf16.msra.mxu0 %v100
    %132 = vmatprep.subr.bf16.mxu0 0
    %133 = vmatpush2.bf16.msra.mxu0 0
    %134 = vmatprep.subr.bf16.mxu0 0
    %135 = vmatpush2.bf16.msra.mxu0 0
    %136 = vmatprep.subr.bf16.mxu0 0
    %137 = vmatpush2.bf16.msra.mxu0 0
    %138 = vmatprep.subr.bf16.mxu0 0
    %139 = vmatpush2.bf16.msra.mxu0 0
    %140 = vmatprep.subr.bf16.mxu0 0
    %141 = vmatpush2.bf16.msra.mxu0 0
    %142 = vmatprep.subr.bf16.mxu0 0
    %143 = vmatpush2.bf16.msra.mxu0 0
    %144 = vmatprep.subr.bf16.mxu0 0
    %145 = vmatpush2.bf16.msra.mxu0 0
    %146 = vmatprep.subr.bf16.mxu0 0
    %147 = vmatpush2.bf16.msra.mxu0 0
    %148 = vmatprep.mubr.bf16.mxu0 0
    %149 = vmatmul.mubr.bf16.gmra.mxu0 %v66
    %v150 = vpop.f32.mrf.mxu0
    %v151 = vadd.f32 0.0, %v150
    %v152 = vpop.f32.mrf.mxu0
    %v153 = vpop.f32.mrf.mxu0
    %v154 = vadd.f32 0.0, %v153
    %v155 = vpop.f32.mrf.mxu0
    %156 = vdwg.mxu0
    %v157 = vadd.f32 %v42, %v151
    %v158 = vadd.f32 %v43, %v154
    %159 = vst [vmem:[#allocation2] sm:$0xff] %v157
    %160 = vst [vmem:[#allocation2 + $0x8] sm:$0xff] %v158
    // Predicated region
    $region30: #{tpu_custom_call.1} parent=1 // pred_check
      %p161 = pneg %p36
    $region31: #{tpu_custom_call.1} parent=1 // pred_check_branch
      %163 = sbr.rel (%p161) target = $region33
    $region32: #{tpu_custom_call.1} parent=1 // pred_region
      %v164 = vld [vmem:[#allocation2] sm:$0xff]
      %v165 = vld [vmem:[#allocation2 + $0x8] sm:$0xff]
      %v166 = vld [vmem:[%s2] sm:$0x1]
      %v168 = vlaneseq
      %v169 = vshrl.u32 %v168, 7
      %v170 = vsub.s32 0, %v169
      %v171 = vrot.slane %v166, %v170
      %v173 = vadd.f32 %v164, %v171
      %v174 = vadd.f32 %v165, %v171
      %v175 = vld [vmem:[%s3] sm:$0xff]
      %v176 = vld [vmem:[%s3 + $0x8] sm:$0xff]
      %v177 = vld [vmem:[%s4] sm:$0xf]
      %179 = vset.pattern.permute.xlu0 0
      %180 = vperm.xlu0 %179, %v175
      %v181 = vpop.permute.xlu0 %180
      %184 = vset.pattern.permute.xlu0 0
      %185 = vperm.xlu0 %184, %v176
      %v186 = vpop.permute.xlu0 %185
      %v188 = vlaneseq
      %v189 = vshrl.u32 %v188, 7
      %v190 = vsub.s32 0, %v189
      %v191 = vrot.slane %v177, %v190
      %v192 = vmul.f32 %v181, %v191
      %v193 = vmul.f32 %v186, %v191
      %v194 = vadd.f32 %v173, %v192
      %v195 = vadd.f32 %v174, %v193
      %196 = vset.pattern.permute.xlu0 1
      %197 = vperm.xlu0 %196, %v175
      %v198 = vpop.permute.xlu0 %197
      %200 = vset.pattern.permute.xlu0 1
      %201 = vperm.xlu0 %200, %v176
      %v202 = vpop.permute.xlu0 %201
      %v204 = vlaneseq
      %v205 = vshrl.u32 %v204, 7
      %v206 = vsub.s32 1, %v205
      %v207 = vrot.slane %v177, %v206
      %v208 = vmul.f32 %v198, %v207
      %v209 = vmul.f32 %v202, %v207
      %v210 = vadd.f32 %v194, %v208
      %v211 = vadd.f32 %v195, %v209
      %212 = vset.pattern.permute.xlu0 2
      %213 = vperm.xlu0 %212, %v175
      %v214 = vpop.permute.xlu0 %213
      %216 = vset.pattern.permute.xlu0 2
      %217 = vperm.xlu0 %216, %v176
      %v218 = vpop.permute.xlu0 %217
      %v220 = vlaneseq
      %v221 = vshrl.u32 %v220, 7
      %v222 = vsub.s32 2, %v221
      %v223 = vrot.slane %v177, %v222
      %v224 = vmul.f32 %v214, %v223
      %v225 = vmul.f32 %v218, %v223
      %v226 = vadd.f32 %v210, %v224
      %v227 = vadd.f32 %v211, %v225
      %228 = vset.pattern.permute.xlu0 3
      %229 = vperm.xlu0 %228, %v175
      %v230 = vpop.permute.xlu0 %229
      %232 = vset.pattern.permute.xlu0 3
      %233 = vperm.xlu0 %232, %v176
      %v234 = vpop.permute.xlu0 %233
      %v236 = vlaneseq
      %v237 = vshrl.u32 %v236, 7
      %v238 = vsub.s32 3, %v237
      %v239 = vrot.slane %v177, %v238
      %v240 = vmul.f32 %v230, %v239
      %v241 = vmul.f32 %v234, %v239
      %v242 = vadd.f32 %v226, %v240
      %v243 = vadd.f32 %v227, %v241
      %244 = vst [vmem:[#allocation6] sm:$0xff] %v242
      %245 = vst [vmem:[#allocation6 + $0x8] sm:$0xff] %v243
    $region33: #{tpu_custom_call.1} parent=1 // pred_fallthru
      _
    // Predicated region
    $region34: #{tpu_custom_call.1} parent=1 // pred_check
      _
    $region35: #{tpu_custom_call.1} parent=1 // pred_check_branch
      %247 = sbr.rel (0) target = $region37
    $region36: #{tpu_custom_call.1} parent=1 // pred_region
      %s249 = ssub.s32 256, 256
      %250 = vsyncadd [#allocation5], %s249
      %s251 = sshll.u32 [#allocation6], 4
      %s252 = int_to_ptr.vmem [resolvable:$true] %s251
      %257 = dma.vmem_to_hbm [thread:$0]  %s252, 256, %s5, [#allocation5], 128, 128, 8
    $region37: #{tpu_custom_call.1} parent=1 // pred_fallthru
      _
    // Predicated region
    $region38: #{tpu_custom_call.1} parent=1 // pred_check
      _
    $region39: #{tpu_custom_call.1} parent=1 // pred_check_branch
      %259 = sbr.rel (0) target = $region41
    $region40: #{tpu_custom_call.1} parent=1 // pred_region
      %260 = dma.done [#allocation5], 256
    $region41: #{tpu_custom_call.1} parent=1 // pred_fallthru
      _
    %261 = vsyncpa [#allocation4], 1
    %262 = vsyncpa [#allocation5], 1

</llo_original>
